<compile_context>
chip_gen: v7x
topology: tpu7x:2x2x1
jax: 0.10.0
libtpu: 0.0.40
codegen_flags: <defaults>
</compile_context>

<pallas_src>
import functools

import jax
import jax.numpy as jnp
import numpy as np
from jax import lax
from jax.experimental import pallas as pl
from jax.experimental.pallas import tpu as pltpu


def _global_local_pred_kernel(intercept_ref, x_ref, centers_t_ref,
                              glob_ref, local_ref, *, hw_total):
    # intercept_ref: SMEM f32[1]
    # x_ref:         VMEM (1, C, T)
    # centers_t_ref: VMEM (K, C)
    # glob_ref:      VMEM (1, K, 1) f32  (resident accumulator across the t axis)
    # local_ref:     VMEM (1, K, T) f32  (lane-dense: T on lanes)
    t = pl.program_id(1)

    x = x_ref[0]                      # (C, T)
    w_t = centers_t_ref[...]          # (K, C)
    bias = intercept_ref[0]

    # (K, C) @ (C, T) -> (K, T); tiny contraction (C) but <1% of bytes moved,
    # so no special MXU shaping is worthwhile here.
    logits = jnp.dot(w_t, x, preferred_element_type=jnp.float32) + bias
    sim = jax.nn.sigmoid(logits)      # (K, T), f32 elementwise (v5e has no bf16 VPU/EUP)

    # Local prediction: the similarity map itself, already in (K, HW) layout.
    local_ref[0] = sim.astype(local_ref.dtype)

    # Global prediction: running spatial sum, normalized on the last tile.
    @pl.when(t == 0)
    def _init():
        glob_ref[...] = jnp.zeros_like(glob_ref)

    glob_ref[...] += jnp.sum(sim, axis=-1, keepdims=True)[None]   # (1, K, 1)

    @pl.when(t == pl.num_programs(1) - 1)
    def _finalize():
        glob_ref[...] = glob_ref[...] * jnp.float32(1.0 / hw_total)


def _pick_hw_tile(hw, max_tile=2048):
    """Largest tile <= max_tile that evenly divides hw (multiple of 128 when tiling)."""
    if hw <= max_tile:
        return hw
    start = max_tile - (max_tile % 128)
    for t in range(start, 127, -128):
        if hw % t == 0:
            return t
    return hw   # fallback: single block (still correct, just less pipelined)


def global_local_pred(x_nchw, centers, intercept, *, max_hw_tile=2048):
    """Pallas equivalent of GlobalLocalPred.forward.

    Args:
      x_nchw:    (B, C, H, W) float32 (PyTorch NCHW convention).
      centers:   (C, K) float32.
      intercept: (1,)  float32.
    Returns:
      global_pred: (B, K) float32
      local_pred:  (B, K, H, W) float32
    """
    B, C, H, W = x_nchw.shape
    in_dim, K = centers.shape
    assert C == in_dim
    HW = H * W

    # Free reshape of NCHW -> (B, C, HW); no HBM transpose pass.
    x = x_nchw.reshape(B, C, HW).astype(jnp.float32)
    centers_t = jnp.transpose(centers.astype(jnp.float32))   # (K, C), tiny
    intercept = intercept.astype(jnp.float32).reshape(1)

    T = _pick_hw_tile(HW, max_hw_tile)
    num_t = HW // T

    kernel = functools.partial(_global_local_pred_kernel, hw_total=HW)

    glob, local = pl.pallas_call(
        kernel,
        out_shape=(jax.ShapeDtypeStruct((B, K, 1), jnp.float32),
                   jax.ShapeDtypeStruct((B, K, HW), jnp.float32)),
        grid=(B, num_t),
        in_specs=[
            pl.BlockSpec(memory_space=pltpu.MemorySpace.SMEM),     # intercept (scalar)
            pl.BlockSpec((1, C, T), lambda b, t: (b, 0, t)),       # x tile (C, T)
            pl.BlockSpec((K, C), lambda b, t: (0, 0)),             # centers^T (whole)
        ],
        out_specs=(
            pl.BlockSpec((1, K, 1), lambda b, t: (b, 0, 0)),       # global accumulator
            pl.BlockSpec((1, K, T), lambda b, t: (b, 0, t)),       # local (lane-dense)
        ),
        compiler_params=pltpu.CompilerParams(
            dimension_semantics=("parallel", "arbitrary")),
    )(intercept, x, centers_t)

    global_pred = glob.reshape(B, K)
    local_pred = local.reshape(B, K, H, W)
    return global_pred, local_pred


def _reference(x_nchw, centers, intercept):
    """Pure-JAX reference mirroring the PyTorch forward exactly."""
    # hyperbolic: x.transpose(1, -1) -> (B, W, H, C); linear with centers^T; sigmoid;
    # dist.transpose(1, 2) -> (B, H, W, K)
    xt = jnp.transpose(x_nchw, (0, 3, 2, 1)).astype(jnp.float32)      # (B, W, H, C)
    sim = jax.nn.sigmoid(
        jnp.einsum("bwhc,ck->bwhk", xt, centers,
                   precision=lax.Precision.HIGHEST) + intercept[0])   # (B, W, H, K)
    sim = jnp.transpose(sim, (0, 2, 1, 3))                            # (B, H, W, K)
    glob = jnp.mean(sim, axis=(1, 2))                                 # (B, K)
    local = jnp.transpose(sim, (0, 3, 1, 2))                          # (B, K, H, W)
    return glob, local


if __name__ == "__main__":
    # Module hyperparameters (synthetic, small).
    in_dim = 4          # channels C
    nb_codeword = 32    # K
    B, H, W = 2, 16, 16

    key = jax.random.PRNGKey(0)
    kx, kc, ki = jax.random.split(key, 3)

    # Deterministic parameter init mimicking the PyTorch module:
    #   centers: kaiming_uniform_ on (in_dim, nb_codeword) -> U(-b, b), b=sqrt(6/fan_in)
    #   intercept: U(-1, 1) scalar
    fan_in = nb_codeword   # torch fan_in for a 2-D tensor is size(1)
    bound = float(np.sqrt(6.0 / fan_in))
    centers = jax.random.uniform(kc, (in_dim, nb_codeword),
                                 minval=-bound, maxval=bound, dtype=jnp.float32)
    intercept = jax.random.uniform(ki, (1,), minval=-1.0, maxval=1.0,
                                   dtype=jnp.float32)

    x = jax.random.normal(kx, (B, in_dim, H, W), dtype=jnp.float32)

    glob, local = global_local_pred(x, centers, intercept)
    jax.block_until_ready((glob, local))

    # Sanity check against the pure-JAX reference.
    glob_ref, local_ref = _reference(x, centers, intercept)
    np.testing.assert_allclose(np.asarray(glob), np.asarray(glob_ref),
                               rtol=1e-5, atol=1e-5)
    np.testing.assert_allclose(np.asarray(local), np.asarray(local_ref),
                               rtol=1e-5, atol=1e-5)

    print("KERNEL_OK")
</pallas_src>

<mosaic_0001>
module attributes {stable_mosaic.version = 11 : i64} {
  func.func @_global_local_pred_kernel(%arg0: i32, %arg1: i32, %arg2: memref<1xf32, #tpu.memory_space<smem>>, %arg3: memref<1x4x256xf32, #tpu.memory_space<vmem>>, %arg4: memref<32x4xf32, #tpu.memory_space<vmem>>, %arg5: memref<1x32x1xf32, #tpu.memory_space<vmem>>, %arg6: memref<1x32x256xf32, #tpu.memory_space<vmem>>) attributes {dimension_semantics = [#tpu.dimension_semantics<parallel>, #tpu.dimension_semantics<arbitrary>], iteration_bounds = array<i64: 2, 1>, scalar_prefetch = 0 : i64, scratch_operands = 0 : i64, tpu.core_type = #tpu.core_type<tc>, window_params = [{transform_indices = @transform_0, window_bounds = array<i64: 1>}, {transform_indices = @transform_1, window_bounds = array<i64: 1, 4, 256>}, {pipeline_mode = #tpu.pipeline_mode<synchronous>, transform_indices = @transform_2, window_bounds = array<i64: 32, 4>}, {transform_indices = @transform_3, window_bounds = array<i64: 1, 32, 1>}, {transform_indices = @transform_4, window_bounds = array<i64: 1, 32, 256>}]} {
    %c0 = arith.constant 0 : index
    %c0_0 = arith.constant 0 : index
    %c0_1 = arith.constant 0 : index
    %0 = vector.load %arg3[%c0, %c0_0, %c0_1] : memref<1x4x256xf32, #tpu.memory_space<vmem>>, vector<1x4x256xf32>
    %1 = vector.shape_cast %0 : vector<1x4x256xf32> to vector<4x256xf32>
    %c0_2 = arith.constant 0 : index
    %c0_3 = arith.constant 0 : index
    %2 = vector.load %arg4[%c0_2, %c0_3] : memref<32x4xf32, #tpu.memory_space<vmem>>, vector<32x4xf32>
    %c0_4 = arith.constant 0 : index
    %3 = memref.load %arg2[%c0_4] : memref<1xf32, #tpu.memory_space<smem>>
    %cst = arith.constant dense<0.000000e+00> : vector<32x256xf32>
    %4 = tpu.matmul %2, %1, %cst {dimension_numbers = #tpu.dot_dimension_numbers<[1], [0], [0], [1], [0, 0, 1, 1], [], []>} : vector<32x4xf32>, vector<4x256xf32>, vector<32x256xf32> -> vector<32x256xf32>
    %5 = vector.broadcast %3 : f32 to vector<32x256xf32>
    %6 = arith.addf %4, %5 : vector<32x256xf32>
    %7 = arith.negf %6 : vector<32x256xf32>
    %8 = math.exp %7 : vector<32x256xf32>
    %cst_5 = arith.constant 1.000000e+00 : f32
    %9 = vector.broadcast %cst_5 : f32 to vector<32x256xf32>
    %10 = arith.addf %9, %8 : vector<32x256xf32>
    %11 = arith.divf %9, %10 : vector<32x256xf32>
    %c0_6 = arith.constant 0 : index
    %c0_7 = arith.constant 0 : index
    %c0_8 = arith.constant 0 : index
    %12 = vector.load %arg6[%c0_6, %c0_7, %c0_8] : memref<1x32x256xf32, #tpu.memory_space<vmem>>, vector<1x32x256xf32>
    %13 = vector.shape_cast %12 : vector<1x32x256xf32> to vector<32x256xf32>
    %14 = vector.shape_cast %11 : vector<32x256xf32> to vector<1x32x256xf32>
    tpu.vector_store %arg6[%c0_6, %c0_7, %c0_8], %14 {strides = array<i32>} : memref<1x32x256xf32, #tpu.memory_space<vmem>>, vector<1x32x256xf32>,
    %c0_i32 = arith.constant 0 : i32
    %15 = arith.cmpi eq, %arg1, %c0_i32 : i32
    %16 = arith.extui %15 : i1 to i32
    %c0_i32_9 = arith.constant 0 : i32
    %17 = arith.cmpi ne, %16, %c0_i32_9 : i32
    scf.if %17 {
      %cst_19 = arith.constant 0.000000e+00 : f32
      %27 = vector.broadcast %cst_19 : f32 to vector<1x32x1xf32>
      %c0_20 = arith.constant 0 : index
      %c0_21 = arith.constant 0 : index
      %c0_22 = arith.constant 0 : index
      %28 = vector.load %arg5[%c0_20, %c0_21, %c0_22] : memref<1x32x1xf32, #tpu.memory_space<vmem>>, vector<1x32x1xf32>
      tpu.vector_store %arg5[%c0_20, %c0_21, %c0_22], %27 {strides = array<i32>} : memref<1x32x1xf32, #tpu.memory_space<vmem>>, vector<1x32x1xf32>,
    } else {
    }
    %c0_10 = arith.constant 0 : index
    %c0_11 = arith.constant 0 : index
    %c0_12 = arith.constant 0 : index
    %18 = vector.load %arg5[%c0_10, %c0_11, %c0_12] : memref<1x32x1xf32, #tpu.memory_space<vmem>>, vector<1x32x1xf32>
    %cst_13 = arith.constant dense<0.000000e+00> : vector<32xf32>
    %19 = vector.multi_reduction <add>, %11, %cst_13 [1] : vector<32x256xf32> to vector<32xf32>
    %20 = vector.shape_cast %19 : vector<32xf32> to vector<32x1xf32>
    %21 = vector.shape_cast %20 : vector<32x1xf32> to vector<1x32x1xf32>
    %22 = arith.addf %18, %21 : vector<1x32x1xf32>
    %c0_14 = arith.constant 0 : index
    %c0_15 = arith.constant 0 : index
    %c0_16 = arith.constant 0 : index
    %23 = vector.load %arg5[%c0_14, %c0_15, %c0_16] : memref<1x32x1xf32, #tpu.memory_space<vmem>>, vector<1x32x1xf32>
    tpu.vector_store %arg5[%c0_14, %c0_15, %c0_16], %22 {strides = array<i32>} : memref<1x32x1xf32, #tpu.memory_space<vmem>>, vector<1x32x1xf32>,
    %c0_i32_17 = arith.constant 0 : i32
    %24 = arith.cmpi eq, %arg1, %c0_i32_17 : i32
    %25 = arith.extui %24 : i1 to i32
    %c0_i32_18 = arith.constant 0 : i32
    %26 = arith.cmpi ne, %25, %c0_i32_18 : i32
    scf.if %26 {
      %c0_19 = arith.constant 0 : index
      %c0_20 = arith.constant 0 : index
      %c0_21 = arith.constant 0 : index
      %27 = vector.load %arg5[%c0_19, %c0_20, %c0_21] : memref<1x32x1xf32, #tpu.memory_space<vmem>>, vector<1x32x1xf32>
      %cst_22 = arith.constant 3.906250e-03 : f32
      %28 = vector.broadcast %cst_22 : f32 to vector<1x32x1xf32>
      %29 = arith.mulf %27, %28 : vector<1x32x1xf32>
      %c0_23 = arith.constant 0 : index
      %c0_24 = arith.constant 0 : index
      %c0_25 = arith.constant 0 : index
      %30 = vector.load %arg5[%c0_23, %c0_24, %c0_25] : memref<1x32x1xf32, #tpu.memory_space<vmem>>, vector<1x32x1xf32>
      tpu.vector_store %arg5[%c0_23, %c0_24, %c0_25], %29 {strides = array<i32>} : memref<1x32x1xf32, #tpu.memory_space<vmem>>, vector<1x32x1xf32>,
    } else {
    }
    return
  }
  func.func @transform_0(%arg0: i32, %arg1: i32) -> i32 {
    %c0_i32 = arith.constant 0 : i32
    %c0_i32_0 = arith.constant 0 : i32
    return %c0_i32 : i32
  }
  func.func @transform_1(%arg0: i32, %arg1: i32) -> (i32, i32, i32) {
    %c0_i32 = arith.constant 0 : i32
    %c0_i32_0 = arith.constant 0 : i32
    return %arg0, %c0_i32, %arg1 : i32, i32, i32
  }
  func.func @transform_2(%arg0: i32, %arg1: i32) -> (i32, i32) {
    %c0_i32 = arith.constant 0 : i32
    %c0_i32_0 = arith.constant 0 : i32
    %c0_i32_1 = arith.constant 0 : i32
    return %c0_i32, %c0_i32_0 : i32, i32
  }
  func.func @transform_3(%arg0: i32, %arg1: i32) -> (i32, i32, i32) {
    %c0_i32 = arith.constant 0 : i32
    %c0_i32_0 = arith.constant 0 : i32
    %c0_i32_1 = arith.constant 0 : i32
    return %arg0, %c0_i32, %c0_i32_0 : i32, i32, i32
  }
  func.func @transform_4(%arg0: i32, %arg1: i32) -> (i32, i32, i32) {
    %c0_i32 = arith.constant 0 : i32
    %c0_i32_0 = arith.constant 0 : i32
    return %arg0, %c0_i32, %arg1 : i32, i32, i32
  }
}

</mosaic_0001>

<llo_original>
// kernel: tpu_custom_call.1
$region0: #{tpu_custom_call.1}
  #allocation0 [shape = 'u32[]', space=smem, size = 0x4, offset = 0x4, fixed_abs, tag = 'smem constant byte address 0x4 - core index']
  #allocation1 [shape = 'u32[144,128]{1,0:T(1,128)}', space=vmem, size = 0x12000, scoped, tag = 'internal scratch']
  #allocation2 [shape = 'f32[1]{0:T(128)S(6)}', space=smem, size = 0x200, scoped, tag = 'scoped memory for tpu_custom_call.1']
  %s0 = inlined_call_operand.<no memory space> [shape: f32[1], index: 0, kind: input, shape index: {}]
  %s1 = inlined_call_operand.vmem [shape: f32[2,4,256], index: 1, kind: input, shape index: {}]
  %s2 = inlined_call_operand.vmem [shape: f32[32,4], index: 2, kind: input, shape index: {}]
  %s3 = inlined_call_operand.vmem [shape: f32[2,32,1], index: 3, kind: output, shape index: {0}]
  %s4 = inlined_call_operand.hbm [shape: f32[2,32,256], index: 4, kind: output, shape index: {1}]
  %5 = xla_tuple %s3, %s4
  %s6 = sld [smem:[#allocation0]]
  $region61: #{tpu_custom_call.1} parent=0
    _
  %s8 = ssub.s32 1, %s6
  %s9 = scalar_select 0, %s8, %s6
  %10 = sst [smem:[#allocation2]] %s0
  $region1: #{tpu_custom_call.1} parent=0
    #allocation3 [shape = 'u8[65536]{0}', space=vmem, size = 0x10000, scoped, tag = 'output window, operand 1']
    #allocation4 [shape = 's32[2]{0}', space=sflag, size = 0x8, scoped, tag = 'scoped memory for tpu_custom_call.1']
    %11 = vsyncpa [#allocation4], 0
    %s12 = scalar_lea.sflag [#allocation4], 1
    %13 = vsyncpa %s12, 0
    loop: start=0, step=1, limit=4
    $region2: #{tpu_custom_call.1} parent=1 // loop_pre_header
      _
    $region3: #{tpu_custom_call.1} parent=1 // loop_header
      %s15 = sphi 0, %s19
      %p16 = scmp.ge.s32.totalorder %s15, 4
      %s22 = sphi 0, %s34
      %s23 = sphi 0, %s30
      %s24 = sphi 0, %s22
      %s25 = sphi 0, %s23
      %s26 = sphi 0, %s24
      %s27 = sphi 0, %s25
      %s35 = sphi 0, %s35
      %s37 = sphi 0, %s35
      %s38 = sphi 0, %s37
      %s52 = sphi 0, %s38
      %s60 = sphi 0, %s62
      %s63 = sphi 0, %s60
      %s64 = sphi 0, %s63
      %s80 = sphi 0, %s64
      %s84 = sphi 0, %s84
      %s86 = sphi 0, %s84
      %s87 = sphi 0, %s86
      %s101 = sphi 0, %s87
      %s107 = sphi 0, %s109
      %s110 = sphi 0, %s107
      %s111 = sphi 0, %s110
      %s127 = sphi 0, %s111
      %s135 = sphi 0, %s137
      %s138 = sphi 0, %s135
      %s139 = sphi 0, %s138
      %s155 = sphi 0, %s139
    $region4: #{tpu_custom_call.1} parent=1 // loop_header_branch
      %18 = sbr.rel (%p16) target = $region8
    $region5: #{tpu_custom_call.1} parent=1 // loop_body
      %s20 = ssub.s32 %s15, 1
      %s21 = ssub.s32 %s15, 2
      %s28 = sadd.s32 1, %s23
      %p29 = scmp.ge.s32.totalorder %s28, 1
      %s30 = scalar_select %p29, 0, %s28
      %s31 = sadd.s32 1, %s22
      %s32 = scalar_select %p29, %s31, %s22
      %p33 = scmp.ge.s32.totalorder %s32, 2
      %s34 = scalar_select %p33, 0, %s32
      %s36 = sadd.s32 %s35, 1
      %p39 = scmp.eq.s32.totalorder %s15, 1
      %p40 = scmp.ne.s32.totalorder %s35, %s37
      %p41 = scmp.eq.s32.totalorder %s15, 0
      %p42 = por %p40, %p41
      %p43 = scmp.ne.s32.totalorder %s35, %s37
      %p44 = scmp.eq.s32.totalorder %s20, 1
      %p45 = por %p43, %p44
      %p46 = scmp.ne.s32.totalorder %s37, %s38
      %p47 = scmp.eq.s32.totalorder %s20, 0
      %p48 = por %p46, %p47
      %p49 = scmp.ne.s32.totalorder %s37, %s38
      %p50 = scmp.eq.s32.totalorder %s21, 1
      %p51 = por %p49, %p50
      %p53 = scmp.ne.s32.totalorder %s38, %s52
      %p54 = scmp.eq.s32.totalorder %s21, 0
      %p55 = por %p53, %p54
      %s56 = ssub.s32 %s22, %s34
      %s57 = ssub.s32 %s23, %s30
      %s58 = sor.u32 %s56, %s57
      %p59 = scmp.eq.s32.totalorder %s58, 0
      %s61 = sadd.s32 %s60, 1
      %s62 = scalar_select %p59, %s60, %s61
      %p65 = pneg %p59
      %p66 = scmp.eq.s32.totalorder %s15, 1
      %p67 = por %p65, %p66
      %p68 = scmp.ne.s32.totalorder %s60, %s63
      %p69 = scmp.eq.s32.totalorder %s15, 0
      %p70 = por %p68, %p69
      %p71 = scmp.ne.s32.totalorder %s60, %s63
      %p72 = scmp.eq.s32.totalorder %s20, 1
      %p73 = por %p71, %p72
      %p74 = scmp.ne.s32.totalorder %s63, %s64
      %p75 = scmp.eq.s32.totalorder %s20, 0
      %p76 = por %p74, %p75
      %p77 = scmp.ne.s32.totalorder %s63, %s64
      %p78 = scmp.eq.s32.totalorder %s21, 1
      %p79 = por %p77, %p78
      %p81 = scmp.ne.s32.totalorder %s64, %s80
      %p82 = scmp.eq.s32.totalorder %s21, 0
      %p83 = por %p81, %p82
      %s85 = sadd.s32 %s84, 1
      %p88 = scmp.eq.s32.totalorder %s15, 1
      %p89 = scmp.ne.s32.totalorder %s84, %s86
      %p90 = scmp.eq.s32.totalorder %s15, 0
      %p91 = por %p89, %p90
      %p92 = scmp.ne.s32.totalorder %s84, %s86
      %p93 = scmp.eq.s32.totalorder %s20, 1
      %p94 = por %p92, %p93
      %p95 = scmp.ne.s32.totalorder %s86, %s87
      %p96 = scmp.eq.s32.totalorder %s20, 0
      %p97 = por %p95, %p96
      %p98 = scmp.ne.s32.totalorder %s86, %s87
      %p99 = scmp.eq.s32.totalorder %s21, 1
      %p100 = por %p98, %p99
      %p102 = scmp.ne.s32.totalorder %s87, %s101
      %p103 = scmp.eq.s32.totalorder %s21, 0
      %p104 = por %p102, %p103
      %s105 = ssub.s32 %s22, %s34
      %p106 = scmp.eq.s32.totalorder %s105, 0
      %s108 = sadd.s32 %s107, 1
      %s109 = scalar_select %p106, %s107, %s108
      %p112 = pneg %p106
      %p113 = scmp.eq.s32.totalorder %s15, 1
      %p114 = por %p112, %p113
      %p115 = scmp.ne.s32.totalorder %s107, %s110
      %p116 = scmp.eq.s32.totalorder %s15, 0
      %p117 = por %p115, %p116
      %p118 = scmp.ne.s32.totalorder %s107, %s110
      %p119 = scmp.eq.s32.totalorder %s20, 1
      %p120 = por %p118, %p119
      %p121 = scmp.ne.s32.totalorder %s110, %s111
      %p122 = scmp.eq.s32.totalorder %s20, 0
      %p123 = por %p121, %p122
      %p124 = scmp.ne.s32.totalorder %s110, %s111
      %p125 = scmp.eq.s32.totalorder %s21, 1
      %p126 = por %p124, %p125
      %p128 = scmp.ne.s32.totalorder %s111, %s127
      %p129 = scmp.eq.s32.totalorder %s21, 0
      %p130 = por %p128, %p129
      %s131 = ssub.s32 %s22, %s34
      %s132 = ssub.s32 %s23, %s30
      %s133 = sor.u32 %s131, %s132
      %p134 = scmp.eq.s32.totalorder %s133, 0
      %s136 = sadd.s32 %s135, 1
      %s137 = scalar_select %p134, %s135, %s136
      %p140 = pneg %p134
      %p141 = scmp.eq.s32.totalorder %s15, 1
      %p142 = por %p140, %p141
      %p143 = scmp.ne.s32.totalorder %s135, %s138
      %p144 = scmp.eq.s32.totalorder %s15, 0
      %p145 = por %p143, %p144
      %p146 = scmp.ne.s32.totalorder %s135, %s138
      %p147 = scmp.eq.s32.totalorder %s20, 1
      %p148 = por %p146, %p147
      %p149 = scmp.ne.s32.totalorder %s138, %s139
      %p150 = scmp.eq.s32.totalorder %s20, 0
      %p151 = por %p149, %p150
      %p152 = scmp.ne.s32.totalorder %s138, %s139
      %p153 = scmp.eq.s32.totalorder %s21, 1
      %p154 = por %p152, %p153
      %p156 = scmp.ne.s32.totalorder %s139, %s155
      %p157 = scmp.eq.s32.totalorder %s21, 0
      %p158 = por %p156, %p157
      %p159 = scmp.le.s32.totalorder 1, %s15
      %p160 = scmp.lt.s32.totalorder %s15, 3
      %p161 = pnand %p159, %p160
      %p162 = pneg %p161
      // Predicated region
      $region9: #{tpu_custom_call.1} parent=5 // pred_check
        _
      $region10: #{tpu_custom_call.1} parent=5 // pred_check_branch
        %164 = sbr.rel (%p161) target = $region12
      $region11: #{tpu_custom_call.1} parent=5 // pred_region
        %s165 = ssub.s32 %s15, 1
        // Predicated region
        $region13: #{tpu_custom_call.1} parent=11 // pred_check
          %p166 = pneg %p48
        $region14: #{tpu_custom_call.1} parent=11 // pred_check_branch
          %168 = sbr.rel (%p166) target = $region16
        $region15: #{tpu_custom_call.1} parent=11 // pred_region
          _
        $region16: #{tpu_custom_call.1} parent=11 // pred_fallthru
          _
        // Predicated region
        $region17: #{tpu_custom_call.1} parent=11 // pred_check
          %p169 = pneg %p97
        $region18: #{tpu_custom_call.1} parent=11 // pred_check_branch
          %171 = sbr.rel (%p169) target = $region20
        $region19: #{tpu_custom_call.1} parent=11 // pred_region
          _
        $region20: #{tpu_custom_call.1} parent=11 // pred_fallthru
          _
      $region12: #{tpu_custom_call.1} parent=5 // pred_fallthru
        _
      %p172 = scmp.lt.s32.totalorder %s15, 2
      // Predicated region
      $region21: #{tpu_custom_call.1} parent=5 // pred_check
        %p173 = pneg %p172
      $region22: #{tpu_custom_call.1} parent=5 // pred_check_branch
        %175 = sbr.rel (%p173) target = $region24
      $region23: #{tpu_custom_call.1} parent=5 // pred_region
        // Predicated region
        $region25: #{tpu_custom_call.1} parent=23 // pred_check
          %p176 = pneg %p70
        $region26: #{tpu_custom_call.1} parent=23 // pred_check_branch
          %178 = sbr.rel (%p176) target = $region28
        $region27: #{tpu_custom_call.1} parent=23 // pred_region
          %s179 = smul.u32 2, %s23
          %p180 = scmp.lt.s32.totalorder %s22, 1
          %s181 = scalar_select %p180, %s22, 1
          %p182 = scmp.lt.s32.totalorder %s179, 1
          %s183 = scalar_select %p182, %s179, 1
          %s184 = smul.addr %s181, 2
          %s185 = sadd.s32 %s183, %s184
          %s186 = smul.addr %s185, 4
          %s187 = scalar_lea.vmem %s1, %s186
          %s188 = smul.u32 2, %s23
        $region28: #{tpu_custom_call.1} parent=23 // pred_fallthru
          _
      $region24: #{tpu_custom_call.1} parent=5 // pred_fallthru
        _
      %p189 = scmp.le.s32.totalorder 1, %s15
      %p190 = scmp.lt.s32.totalorder %s15, 3
      %p191 = pnand %p189, %p190
      %p192 = pneg %p191
      // Predicated region
      $region29: #{tpu_custom_call.1} parent=5 // pred_check
        _
      $region30: #{tpu_custom_call.1} parent=5 // pred_check_branch
        %194 = sbr.rel (%p191) target = $region32
      $region31: #{tpu_custom_call.1} parent=5 // pred_region
        %s195 = ssub.s32 %s15, 1
        %p196 = pneg %p48
        %p197 = pneg %p45
        %s198 = smul.u32 2, %s25
        %p199 = scmp.lt.s32.totalorder %s24, 1
        %s200 = scalar_select %p199, %s24, 1
        %p201 = scmp.lt.s32.totalorder %s198, 1
        %s202 = scalar_select %p201, %s198, 1
        %s203 = smul.addr %s200, 2
        %s204 = sadd.s32 %s202, %s203
        %s205 = smul.addr %s204, 4
        %s206 = scalar_lea.vmem %s1, %s205
        %p207 = pneg %p76
        %p208 = pneg %p73
        %p209 = pneg %p97
        %p210 = pneg %p94
        %p211 = pneg %p123
        %p212 = pneg %p120
        %p213 = scmp.lt.s32.totalorder %s24, 1
        %s214 = scalar_select %p213, %s24, 1
        %s215 = smul.addr %s214, 4
        %s216 = smul.addr %s215, 8
        %s217 = scalar_lea.vmem %s3, %s216
        %p218 = pneg %p151
        %p219 = pneg %p148
        %s220 = sand.u32 %s138, 1
        %s221 = scalar_lea.sflag [#allocation4], %s220
        %s222 = sand.u32 %s138, 1
        %s223 = smul.addr %s222, 64
        %s224 = scalar_lea.vmem [#allocation3], %s223
        %s225 = smul.u32 2, %s25
        %p226 = scmp.lt.s32.totalorder %s24, 1
        %s227 = scalar_select %p226, %s24, 1
        %p228 = scmp.lt.s32.totalorder %s225, 1
        %s229 = scalar_select %p228, %s225, 1
        %s230 = smul.addr %s227, 2
        %s231 = sadd.s32 %s229, %s230
        %s232 = smul.addr %s231, 4
        %s233 = scalar_lea.vmem %s1, %s232
        %s234 = smul.u32 2, %s25
        %p235 = scmp.lt.s32.totalorder %s24, 1
        %s236 = scalar_select %p235, %s24, 1
        %s237 = smul.addr %s236, 4
        %s238 = smul.addr %s237, 8
        %s239 = scalar_lea.vmem %s3, %s238
        %s240 = smul.u32 2, %s25
        %v241 = vld [vmem:[%s233] sm:$0xff]
        %v242 = vld [vmem:[%s2] sm:$0xff]
        %v243 = vld [vmem:[%s2 + $0x8] sm:$0xff]
        %v244 = vld [vmem:[%s2 + $0x10] sm:$0xff]
        %v245 = vld [vmem:[%s2 + $0x18] sm:$0xff]
        %s246 = sld [smem:[#allocation2]]
        %v247 = vstv %s246
        %v249 = vcombine.high %v241, %v241
        %vm250 = vcmask 31744
        %v252 = vsel %vm250, %v242, 0
        %v255 = vsel %vm250, %v243, 0
        %v258 = vsel %vm250, %v244, 0
        %v261 = vsel %vm250, %v245, 0
        %vm263 = vcmask 1043456
        %v264 = vsel %vm263, %v241, 0
        %v266 = vsel %vm263, %v249, 0
        %268 = vmatprep.subr.mxu0 %v266
        %269 = vmatpush1.msra.mxu0 %v264
        %270 = vmatprep.subr.mxu0 0.0
        %271 = vmatpush1.msra.mxu0 0.0
        %272 = vmatprep.subr.mxu0 0.0
        %273 = vmatpush1.msra.mxu0 0.0
        %274 = vmatprep.subr.mxu0 0.0
        %275 = vmatpush1.msra.mxu0 0.0
        %276 = vmatprep.subr.mxu0 0.0
        %277 = vmatpush1.msra.mxu0 0.0
        %278 = vmatprep.subr.mxu0 0.0
        %279 = vmatpush1.msra.mxu0 0.0
        %280 = vmatprep.subr.mxu0 0.0
        %281 = vmatpush1.msra.mxu0 0.0
        %282 = vmatprep.subr.mxu0 0.0
        %283 = vmatpush1.msra.mxu0 0.0
        %284 = vmatprep.subr.mxu0 0.0
        %285 = vmatpush1.msra.mxu0 0.0
        %286 = vmatprep.subr.mxu0 0.0
        %287 = vmatpush1.msra.mxu0 0.0
        %288 = vmatprep.subr.mxu0 0.0
        %289 = vmatpush1.msra.mxu0 0.0
        %290 = vmatprep.subr.mxu0 0.0
        %291 = vmatpush1.msra.mxu0 0.0
        %292 = vmatprep.subr.mxu0 0.0
        %293 = vmatpush1.msra.mxu0 0.0
        %294 = vmatprep.subr.mxu0 0.0
        %295 = vmatpush1.msra.mxu0 0.0
        %296 = vmatprep.subr.mxu0 0.0
        %297 = vmatpush1.msra.mxu0 0.0
        %298 = vmatprep.subr.mxu0 0.0
        %299 = vmatpush1.msra.mxu0 0.0
        %300 = vmatprep.subr.mxu0 0.0
        %301 = vmatpush1.msra.mxu0 0.0
        %302 = vmatprep.subr.mxu0 0.0
        %303 = vmatpush1.msra.mxu0 0.0
        %304 = vmatprep.subr.mxu0 0.0
        %305 = vmatpush1.msra.mxu0 0.0
        %306 = vmatprep.subr.mxu0 0.0
        %307 = vmatpush1.msra.mxu0 0.0
        %308 = vmatprep.subr.mxu0 0.0
        %309 = vmatpush1.msra.mxu0 0.0
        %310 = vmatprep.subr.mxu0 0.0
        %311 = vmatpush1.msra.mxu0 0.0
        %312 = vmatprep.subr.mxu0 0.0
        %313 = vmatpush1.msra.mxu0 0.0
        %314 = vmatprep.subr.mxu0 0.0
        %315 = vmatpush1.msra.mxu0 0.0
        %316 = vmatprep.subr.mxu0 0.0
        %317 = vmatpush1.msra.mxu0 0.0
        %318 = vmatprep.subr.mxu0 0.0
        %319 = vmatpush1.msra.mxu0 0.0
        %320 = vmatprep.subr.mxu0 0.0
        %321 = vmatpush1.msra.mxu0 0.0
        %322 = vmatprep.subr.mxu0 0.0
        %323 = vmatpush1.msra.mxu0 0.0
        %324 = vmatprep.subr.mxu0 0.0
        %325 = vmatpush1.msra.mxu0 0.0
        %326 = vmatprep.subr.mxu0 0.0
        %327 = vmatpush1.msra.mxu0 0.0
        %328 = vmatprep.subr.mxu0 0.0
        %329 = vmatpush1.msra.mxu0 0.0
        %330 = vmatprep.subr.mxu0 0.0
        %331 = vmatpush1.msra.mxu0 0.0
        %332 = vmatprep.mubr.f32.mxu0 0.0
        %333 = vmatmul.mubr.f32.gmra.mrb[0].mxu0 %v252
        %v334 = vpop.f32.mrb[0].mxu0
        %v335 = vadd.f32 %v247, %v334
        %v336 = vpop.f32.mrb[0].mxu0
        %v337 = vadd.f32 %v247, %v336
        %338 = vmatprep.mubr.f32.mxu0 0.0
        %339 = vmatmul.mubr.f32.gmra.mrb[0].mxu0 %v255
        %v340 = vpop.f32.mrb[0].mxu0
        %v341 = vadd.f32 %v247, %v340
        %v342 = vpop.f32.mrb[0].mxu0
        %v343 = vadd.f32 %v247, %v342
        %344 = vmatprep.mubr.f32.mxu0 0.0
        %345 = vmatmul.mubr.f32.gmra.mrb[0].mxu0 %v258
        %v346 = vpop.f32.mrb[0].mxu0
        %v347 = vadd.f32 %v247, %v346
        %v348 = vpop.f32.mrb[0].mxu0
        %v349 = vadd.f32 %v247, %v348
        %350 = vmatprep.mubr.f32.mxu0 0.0
        %351 = vmatmul.mubr.f32.gmra.mrb[0].mxu0 %v261
        %v352 = vpop.f32.mrb[0].mxu0
        %v353 = vadd.f32 %v247, %v352
        %v354 = vpop.f32.mrb[0].mxu0
        %v355 = vadd.f32 %v247, %v354
        %356 = vdwg.mxu0
        %v357 = vxor.u32 %v335, 2147483648
        %v358 = vxor.u32 %v337, 2147483648
        %v359 = vxor.u32 %v341, 2147483648
        %v360 = vxor.u32 %v343, 2147483648
        %v361 = vxor.u32 %v347, 2147483648
        %v362 = vxor.u32 %v349, 2147483648
        %v363 = vxor.u32 %v353, 2147483648
        %v364 = vxor.u32 %v355, 2147483648
        %v365 = vmul.f32 %v357, 1.442695
        %v366 = vpow.pop %v365
        %v367 = vmul.f32 %v358, 1.442695
        %v368 = vpow.pop %v367
        %v369 = vmul.f32 %v359, 1.442695
        %v370 = vpow.pop %v369
        %v371 = vmul.f32 %v360, 1.442695
        %v372 = vpow.pop %v371
        %v373 = vmul.f32 %v361, 1.442695
        %v374 = vpow.pop %v373
        %v375 = vmul.f32 %v362, 1.442695
        %v376 = vpow.pop %v375
        %v377 = vmul.f32 %v363, 1.442695
        %v378 = vpow.pop %v377
        %v379 = vmul.f32 %v364, 1.442695
        %v380 = vpow.pop %v379
        %v381 = vadd.f32 %v366, 1.0
        %v382 = vadd.f32 %v368, 1.0
        %v383 = vadd.f32 %v370, 1.0
        %v384 = vadd.f32 %v372, 1.0
        %v385 = vadd.f32 %v374, 1.0
        %v386 = vadd.f32 %v376, 1.0
        %v387 = vadd.f32 %v378, 1.0
        %v388 = vadd.f32 %v380, 1.0
        %v389 = vrcp.pop %v381
        %v390 = vmul.f32 1.0, %v389
        %v391 = vrcp.pop %v382
        %v392 = vmul.f32 1.0, %v391
        %v393 = vrcp.pop %v383
        %v394 = vmul.f32 1.0, %v393
        %v395 = vrcp.pop %v384
        %v396 = vmul.f32 1.0, %v395
        %v397 = vrcp.pop %v385
        %v398 = vmul.f32 1.0, %v397
        %v399 = vrcp.pop %v386
        %v400 = vmul.f32 1.0, %v399
        %v401 = vrcp.pop %v387
        %v402 = vmul.f32 1.0, %v401
        %v403 = vrcp.pop %v388
        %v404 = vmul.f32 1.0, %v403
        %405 = vst [vmem:[%s224] sm:$0xff] %v390
        %406 = vst [vmem:[%s224 + $0x8] sm:$0xff] %v392
        %407 = vst [vmem:[%s224 + $0x10] sm:$0xff] %v394
        %408 = vst [vmem:[%s224 + $0x18] sm:$0xff] %v396
        %409 = vst [vmem:[%s224 + $0x20] sm:$0xff] %v398
        %410 = vst [vmem:[%s224 + $0x28] sm:$0xff] %v400
        %411 = vst [vmem:[%s224 + $0x30] sm:$0xff] %v402
        %412 = vst [vmem:[%s224 + $0x38] sm:$0xff] %v404
        %p413 = scmp.eq.s32.totalorder %s25, 0
        // Predicated region
        $region33: #{tpu_custom_call.1} parent=31 // pred_check
          %p414 = pneg %p413
        $region34: #{tpu_custom_call.1} parent=31 // pred_check_branch
          %416 = sbr.rel (%p414) target = $region36
        $region35: #{tpu_custom_call.1} parent=31 // pred_region
          %vm417 = vcmask 7168
          %418 = vst.msk [vmem:[%s239] sm:$0xff] %vm417, 0.0
          %419 = vst.msk [vmem:[%s239 + $0x8] sm:$0xff] %vm417, 0.0
          %420 = vst.msk [vmem:[%s239 + $0x10] sm:$0xff] %vm417, 0.0
          %421 = vst.msk [vmem:[%s239 + $0x18] sm:$0xff] %vm417, 0.0
        $region36: #{tpu_custom_call.1} parent=31 // pred_fallthru
          _
        %v422 = vld [vmem:[%s239] sm:$0xff]
        %v423 = vld [vmem:[%s239 + $0x8] sm:$0xff]
        %v424 = vld [vmem:[%s239 + $0x10] sm:$0xff]
        %v425 = vld [vmem:[%s239 + $0x18] sm:$0xff]
        %v426 = vadd.f32 %v390, %v392
        %427 = vadd.xlane.f32.xlu0 %v426
        %v428 = vpop.xlane.xlu0 %427
        %v429 = vadd.f32 %v394, %v396
        %430 = vadd.xlane.f32.xlu0 %v429
        %v431 = vpop.xlane.xlu0 %430
        %v432 = vadd.f32 %v398, %v400
        %433 = vadd.xlane.f32.xlu0 %v432
        %v434 = vpop.xlane.xlu0 %433
        %v435 = vadd.f32 %v402, %v404
        %436 = vadd.xlane.f32.xlu0 %v435
        %v437 = vpop.xlane.xlu0 %436
        %v438 = vadd.f32 %v422, %v428
        %v439 = vadd.f32 %v423, %v431
        %v440 = vadd.f32 %v424, %v434
        %v441 = vadd.f32 %v425, %v437
        %vm442 = vcmask 7168
        %443 = vst.msk [vmem:[%s239] sm:$0xff] %vm442, %v438
        %444 = vst.msk [vmem:[%s239 + $0x8] sm:$0xff] %vm442, %v439
        %445 = vst.msk [vmem:[%s239 + $0x10] sm:$0xff] %vm442, %v440
        %446 = vst.msk [vmem:[%s239 + $0x18] sm:$0xff] %vm442, %v441
        // Predicated region
        $region37: #{tpu_custom_call.1} parent=31 // pred_check
          %p447 = pneg %p413
        $region38: #{tpu_custom_call.1} parent=31 // pred_check_branch
          %449 = sbr.rel (%p447) target = $region40
        $region39: #{tpu_custom_call.1} parent=31 // pred_region
          %v450 = vld [vmem:[%s239] sm:$0xff]
          %v451 = vld [vmem:[%s239 + $0x8] sm:$0xff]
          %v452 = vld [vmem:[%s239 + $0x10] sm:$0xff]
          %v453 = vld [vmem:[%s239 + $0x18] sm:$0xff]
          %v454 = vmul.f32 %v450, 0.00390625
          %v455 = vmul.f32 %v451, 0.00390625
          %v456 = vmul.f32 %v452, 0.00390625
          %v457 = vmul.f32 %v453, 0.00390625
          %458 = vst.msk [vmem:[%s239] sm:$0xff] %vm442, %v454
          %459 = vst.msk [vmem:[%s239 + $0x8] sm:$0xff] %vm442, %v455
          %460 = vst.msk [vmem:[%s239 + $0x10] sm:$0xff] %vm442, %v456
          %461 = vst.msk [vmem:[%s239 + $0x18] sm:$0xff] %vm442, %v457
        $region40: #{tpu_custom_call.1} parent=31 // pred_fallthru
          _
        %p462 = scmp.lt.s32.totalorder %s24, 1
        %s463 = scalar_select %p462, %s24, 1
        %s464 = smul.addr %s463, 4
        %s465 = smul.addr %s464, 8
        %s466 = scalar_lea.vmem %s3, %s465
        %s467 = sand.u32 %s138, 1
        %s468 = scalar_lea.sflag [#allocation4], %s467
        %s469 = sand.u32 %s138, 1
        %s470 = smul.addr %s469, 64
        %s471 = scalar_lea.vmem [#allocation3], %s470
        // Predicated region
        $region41: #{tpu_custom_call.1} parent=31 // pred_check
          %p472 = pneg %p120
        $region42: #{tpu_custom_call.1} parent=31 // pred_check_branch
          %474 = sbr.rel (%p472) target = $region44
        $region43: #{tpu_custom_call.1} parent=31 // pred_region
          _
        $region44: #{tpu_custom_call.1} parent=31 // pred_fallthru
          _
        // Predicated region
        $region45: #{tpu_custom_call.1} parent=31 // pred_check
          %p475 = pneg %p148
        $region46: #{tpu_custom_call.1} parent=31 // pred_check_branch
          %477 = sbr.rel (%p475) target = $region48
        $region47: #{tpu_custom_call.1} parent=31 // pred_region
          %s478 = smul.u32 2, %s25
          %s480 = ssub.s32 1024, 1024
          %481 = vsyncadd %s468, %s480
          %s482 = smul.addr %s24, 8
          %s483 = sadd.s32 %s478, %s482
          %s484 = smul.addr %s483, 128
          %s485 = scalar_lea.hbm %s4, %s484
          %s486 = sshll.u32 %s471, 4
          %s487 = int_to_ptr.vmem [resolvable:$true] %s486
          %492 = dma.vmem_to_hbm [thread:$0]  %s487, 1024, %s485, %s468, 256, 256, 16
        $region48: #{tpu_custom_call.1} parent=31 // pred_fallthru
          _
      $region32: #{tpu_custom_call.1} parent=5 // pred_fallthru
        _
      %p493 = scmp.le.s32.totalorder 2, %s15
      // Predicated region
      $region49: #{tpu_custom_call.1} parent=5 // pred_check
        %p494 = pneg %p493
      $region50: #{tpu_custom_call.1} parent=5 // pred_check_branch
        %496 = sbr.rel (%p494) target = $region52
      $region51: #{tpu_custom_call.1} parent=5 // pred_region
        %s497 = ssub.s32 %s15, 2
        // Predicated region
        $region53: #{tpu_custom_call.1} parent=51 // pred_check
          %p498 = pneg %p126
        $region54: #{tpu_custom_call.1} parent=51 // pred_check_branch
          %500 = sbr.rel (%p498) target = $region56
        $region55: #{tpu_custom_call.1} parent=51 // pred_region
          %p501 = scmp.lt.s32.totalorder %s26, 1
          %s502 = scalar_select %p501, %s26, 1
          %s503 = smul.addr %s502, 4
          %s504 = smul.addr %s503, 8
          %s505 = scalar_lea.vmem %s3, %s504
        $region56: #{tpu_custom_call.1} parent=51 // pred_fallthru
          _
        // Predicated region
        $region57: #{tpu_custom_call.1} parent=51 // pred_check
          %p506 = pneg %p154
        $region58: #{tpu_custom_call.1} parent=51 // pred_check_branch
          %508 = sbr.rel (%p506) target = $region60
        $region59: #{tpu_custom_call.1} parent=51 // pred_region
          %s509 = sand.u32 %s139, 1
          %s510 = scalar_lea.sflag [#allocation4], %s509
          %s511 = sand.u32 %s139, 1
          %s512 = smul.addr %s511, 64
          %s513 = scalar_lea.vmem [#allocation3], %s512
          %514 = dma.done %s510, 1024
        $region60: #{tpu_custom_call.1} parent=51 // pred_fallthru
          _
      $region52: #{tpu_custom_call.1} parent=5 // pred_fallthru
        _
    $region6: #{tpu_custom_call.1} parent=1 // loop_footer
      %s19 = sadd.s32 1, %s15
    $region7: #{tpu_custom_call.1} parent=1 // loop_footer_branch
      %14 = sbr.rel target = $region3
    $region8: #{tpu_custom_call.1} parent=1 // loop_exit
      _
    %515 = vsyncpa [#allocation4], 1
    %s516 = scalar_lea.sflag [#allocation4], 1
    %517 = vsyncpa %s516, 1

</llo_original>
